<compile_context>
chip_gen: v7x
topology: tpu7x:2x2x1
jax: 0.10.0
libtpu: 0.0.40
codegen_flags: <defaults>
</compile_context>

<pallas_src>
import functools

import jax
import jax.numpy as jnp
from jax.experimental import pallas as pl
from jax.experimental.pallas import tpu as pltpu

KSIZE = 3
PAD = 1
NEG_SLOPE = 0.01
# Tap order k = (dy + 1) * 3 + (dx + 1); must match the weight-matrix column order.
TAPS = tuple((dy, dx) for dy in (-1, 0, 1) for dx in (-1, 0, 1))


@functools.cache
def _roll_matches_jnp() -> bool:
    """Probe pltpu.roll's rotation direction once (robust across jax versions).

    Cached; runs one tiny eager pallas_call the first time it is needed.
    """
    def probe(x_ref, o_ref):
        o_ref[...] = pltpu.roll(x_ref[...], 1, axis=1)

    x = jnp.arange(8 * 128, dtype=jnp.float32).reshape(8, 128)
    got = pl.pallas_call(
        probe, out_shape=jax.ShapeDtypeStruct((8, 128), jnp.float32))(x)
    return bool(jnp.array_equal(got, jnp.roll(x, 1, axis=1)))


def _conv3x3_lrelu_kernel(w_ref, b_ref, mask_ref, x_ref, o_ref, *,
                          width, roll_like_jnp):
    """One grid step = `bn` batch elements, each a full lane-dense (C, H*W) tile.

    w_ref:    (C_out, 9*C_in) f32   conv weight, tap-major (k = (dy+1)*3 + (dx+1))
    b_ref:    (C_out, 1)      f32   bias
    mask_ref: (9, H*W)        f32   per-tap 0/1 boundary masks (zero-padding replacement)
    x_ref:    (bn, C_in,  H*W)      input block
    o_ref:    (bn, C_out, H*W)      output block
    """
    bn, _, hw = x_ref.shape
    # Grid-invariant operands, hoisted out of the batch loop.
    w = w_ref[...]
    b = b_ref[...]
    mask = mask_ref[...]

    for bi in range(bn):
        x = x_ref[bi].astype(jnp.float32)            # (C_in, H*W), lane-dense

        # im2col via lane rotations: tap (dy, dx) samples flat index p + s.
        taps = []
        for k, (dy, dx) in enumerate(TAPS):
            s = dy * width + dx
            if s == 0:
                t = x                                # center tap: always valid, no mask
            else:
                amt = (-s) % hw if roll_like_jnp else s % hw
                t = pltpu.roll(x, amt, axis=1)       # XLU lane rotate
                t = t * mask[k:k + 1, :]             # boundary zeroing (sublane bcast)
            taps.append(t)
        patches = jnp.concatenate(taps, axis=0)      # (9*C_in, H*W)

        # All conv MACs in one MXU matmul; bias + LeakyReLU fused on the f32 acc.
        acc = jnp.dot(w, patches, preferred_element_type=jnp.float32)
        acc = acc + b                                # lane broadcast of (C_out, 1)
        y = jnp.maximum(acc, NEG_SLOPE * acc)        # LeakyReLU(0.01)
        o_ref[bi] = y.astype(o_ref.dtype)            # lane-dense store


def _tap_masks(H, W):
    """Per-tap 0/1 validity masks over the flattened H*W axis, shape (9, H*W)."""
    hw = H * W
    col = jnp.arange(hw, dtype=jnp.int32) % W
    row = jnp.arange(hw, dtype=jnp.int32) // W
    rows = []
    for dy, dx in TAPS:
        valid = jnp.ones((hw,), dtype=bool)
        if dx == 1:
            valid &= col < (W - 1)
        elif dx == -1:
            valid &= col > 0
        if dy == 1:
            valid &= row < (H - 1)
        elif dy == -1:
            valid &= row > 0
        rows.append(valid)
    return jnp.stack(rows, axis=0).astype(jnp.float32)


def _pick_batch_tile(N, C, hw, batch_tile, vmem_budget_bytes=20 << 20):
    """Largest batch tile dividing N whose per-step f32 working set fits the budget."""
    if batch_tile is None:
        per_b = (C + 9 * C + C) * hw * 4 * 2          # x + patches + out, 2x slack
        batch_tile = max(1, vmem_budget_bytes // max(per_b, 1))
    bn = max(1, min(int(batch_tile), N))
    while N % bn:
        bn -= 1
    return bn


def conv3x3_leaky_relu(x, weight, bias, *, batch_tile=None):
    """NCHW Conv2d(C, C, 3, 1, 1) + LeakyReLU(0.01), matching the PyTorch module.

    x: (N, C, H, W); weight: (C, C, 3, 3) (OIHW); bias: (C,).
    """
    N, C, H, W = x.shape
    c_out, c_in, kh, kw = weight.shape
    assert (c_out, c_in, kh, kw) == (C, C, KSIZE, KSIZE)
    hw = H * W

    # Lane-dense spatial layout (H*W = 256 for the demo: a multiple of 128).
    x_flat = x.reshape(N, C, hw)

    # Conv weight as one matmul operand; column = ((dy+1)*3 + (dx+1))*C_in + ci.
    w_mat = jnp.transpose(weight, (0, 2, 3, 1)).reshape(
        c_out, KSIZE * KSIZE * c_in).astype(jnp.float32)
    b_col = bias.reshape(c_out, 1).astype(jnp.float32)
    mask = _tap_masks(H, W)                            # (9, H*W) — tiny, VMEM-resident

    # Fatter grid steps amortize the fixed per-step pipeline cost at small shapes.
    bn = _pick_batch_tile(N, C, hw, batch_tile)

    kernel = functools.partial(_conv3x3_lrelu_kernel, width=W,
                               roll_like_jnp=_roll_matches_jnp())

    flops = 2 * N * c_out * (KSIZE * KSIZE * c_in) * hw + 3 * N * c_out * hw
    bytes_accessed = int(2 * x_flat.size * x_flat.dtype.itemsize
                         + (w_mat.size + b_col.size + mask.size) * 4)

    out_flat = pl.pallas_call(
        kernel,
        out_shape=jax.ShapeDtypeStruct((N, C, hw), x.dtype),
        grid_spec=pltpu.PrefetchScalarGridSpec(
            num_scalar_prefetch=0,
            grid=(N // bn,),
            in_specs=[
                pl.BlockSpec((c_out, KSIZE * KSIZE * c_in), lambda n: (0, 0)),
                pl.BlockSpec((c_out, 1), lambda n: (0, 0)),
                pl.BlockSpec((KSIZE * KSIZE, hw), lambda n: (0, 0)),
                pl.BlockSpec((bn, C, hw), lambda n: (n, 0, 0)),
            ],
            out_specs=pl.BlockSpec((bn, C, hw), lambda n: (n, 0, 0)),
        ),
        compiler_params=pltpu.CompilerParams(
            dimension_semantics=("parallel",)),
        cost_estimate=pl.CostEstimate(flops=flops, transcendentals=0,
                                      bytes_accessed=bytes_accessed),
    )(w_mat, b_col, mask, x_flat)
    return out_flat.reshape(N, C, H, W)


def _reference(x, weight, bias):
    """Pure-JAX reference mirroring nn.Conv2d(C, C, 3, 1, 1) + LeakyReLU(0.01)."""
    y = jax.lax.conv_general_dilated(
        x, weight, window_strides=(1, 1), padding=((PAD, PAD), (PAD, PAD)),
        dimension_numbers=("NCHW", "OIHW", "NCHW"),
        precision=jax.lax.Precision.HIGHEST)
    y = y + bias[None, :, None, None]
    return jnp.where(y >= 0, y, NEG_SLOPE * y)


if __name__ == "__main__":
    key = jax.random.PRNGKey(0)
    kx, kw, kb = jax.random.split(key, 3)

    # Small demo shape; H*W = 256 keeps the kernel's last dim lane-dense.
    N, C, H, W = 2, 8, 16, 16
    x = jax.random.normal(kx, (N, C, H, W), dtype=jnp.float32)

    # PyTorch Conv2d default init: U(-1/sqrt(fan_in), +1/sqrt(fan_in)).
    fan_in = C * KSIZE * KSIZE
    bound = 1.0 / (fan_in ** 0.5)
    weight = jax.random.uniform(kw, (C, C, KSIZE, KSIZE), jnp.float32,
                                minval=-bound, maxval=bound)
    bias = jax.random.uniform(kb, (C,), jnp.float32, minval=-bound, maxval=bound)

    out = conv3x3_leaky_relu(x, weight, bias)
    jax.block_until_ready(out)

    ref = _reference(x, weight, bias)
    err = float(jnp.max(jnp.abs(out - ref)))
    assert out.shape == ref.shape
    # Tolerance sized for TPU MXU multi-pass f32 matmul vs XLA conv rounding.
    assert jnp.allclose(out, ref, atol=1e-2, rtol=1e-2), f"max abs err {err}"

    print("KERNEL_OK")
</pallas_src>

<mosaic_0001>
module attributes {stable_mosaic.version = 11 : i64} {
  func.func @probe(%arg0: memref<8x128xf32, #tpu.memory_space<vmem>>, %arg1: memref<8x128xf32, #tpu.memory_space<vmem>>) attributes {dimension_semantics = [], scalar_prefetch = 0 : i64, scratch_operands = 0 : i64, tpu.core_type = #tpu.core_type<tc>} {
    %c0 = arith.constant 0 : index
    %c0_0 = arith.constant 0 : index
    %0 = vector.load %arg0[%c0, %c0_0] : memref<8x128xf32, #tpu.memory_space<vmem>>, vector<8x128xf32>
    %c1_i32 = arith.constant 1 : i32
    %1 = tpu.dynamic_rotate %0 by %c1_i32 dim 1 : vector<8x128xf32>, i32 -> vector<8x128xf32>
    %c0_1 = arith.constant 0 : index
    %c0_2 = arith.constant 0 : index
    %2 = vector.load %arg1[%c0_1, %c0_2] : memref<8x128xf32, #tpu.memory_space<vmem>>, vector<8x128xf32>
    tpu.vector_store %arg1[%c0_1, %c0_2], %1 {strides = array<i32>} : memref<8x128xf32, #tpu.memory_space<vmem>>, vector<8x128xf32>,
    return
  }
}

</mosaic_0001>

<llo_original>
// kernel: tpu_custom_call.1
$region0: #{tpu_custom_call.1}
  #allocation0 [shape = 'u32[]', space=smem, size = 0x4, offset = 0x4, fixed_abs, tag = 'smem constant byte address 0x4 - core index']
  #allocation1 [shape = 'u32[144,128]{1,0:T(1,128)}', space=vmem, size = 0x12000, scoped, tag = 'internal scratch']
  %s0 = inlined_call_operand.hbm [shape: f32[8,128], index: 0, kind: input, shape index: {}]
  %s1 = inlined_call_operand.hbm [shape: f32[8,128], index: 1, kind: output, shape index: {}]
  %s2 = sld [smem:[#allocation0]]
  $region18: #{tpu_custom_call.1} parent=0
    _
  %s4 = ssub.s32 1, %s2
  %s5 = scalar_select 0, %s4, %s2
  $region1: #{tpu_custom_call.1} parent=0
    #allocation2 [shape = 'u8[4096]{0}', space=vmem, size = 0x1000, scoped, tag = 'input window, operand 0, single buffered']
    #allocation3 [shape = 's32[1]{0}', space=sflag, size = 0x4, scoped, tag = 'scoped memory for tpu_custom_call.1']
    #allocation4 [shape = 's32[1]{0}', space=sflag, size = 0x4, scoped, tag = 'scoped memory for tpu_custom_call.1']
    #allocation5 [shape = 'u8[4096]{0}', space=vmem, size = 0x1000, scoped, tag = 'output window, operand 0, single buffered']
    %6 = vsyncpa [#allocation3], 0
    %7 = vsyncpa [#allocation4], 0
    // Predicated region
    $region2: #{tpu_custom_call.1} parent=1 // pred_check
      _
    $region3: #{tpu_custom_call.1} parent=1 // pred_check_branch
      %9 = sbr.rel (0) target = $region5
    $region4: #{tpu_custom_call.1} parent=1 // pred_region
      %s11 = ssub.s32 128, 128
      %12 = vsyncadd [#allocation3], %s11
      %s14 = sshll.u32 [#allocation2], 4
      %s15 = int_to_ptr.vmem [resolvable:$true] %s14
      %17 = dma.hbm_to_vmem [thread:$0]  %s0, 128, %s15, [#allocation3]
    $region5: #{tpu_custom_call.1} parent=1 // pred_fallthru
      _
    // Predicated region
    $region6: #{tpu_custom_call.1} parent=1 // pred_check
      _
    $region7: #{tpu_custom_call.1} parent=1 // pred_check_branch
      %19 = sbr.rel (0) target = $region9
    $region8: #{tpu_custom_call.1} parent=1 // pred_region
      %20 = dma.done [#allocation3], 128
    $region9: #{tpu_custom_call.1} parent=1 // pred_fallthru
      _
    %v21 = vld [vmem:[#allocation2] sm:$0xff]
    %22 = vrot.lane.b32.xlu0 %v21, 1
    %v23 = vpop.permute.xlu0 %22
    %24 = vst [vmem:[#allocation5] sm:$0xff] %v23
    // Predicated region
    $region10: #{tpu_custom_call.1} parent=1 // pred_check
      _
    $region11: #{tpu_custom_call.1} parent=1 // pred_check_branch
      %26 = sbr.rel (0) target = $region13
    $region12: #{tpu_custom_call.1} parent=1 // pred_region
      %s28 = ssub.s32 128, 128
      %29 = vsyncadd [#allocation4], %s28
      %s31 = sshll.u32 [#allocation5], 4
      %s32 = int_to_ptr.vmem [resolvable:$true] %s31
      %34 = dma.vmem_to_hbm [thread:$0]  %s32, 128, %s1, [#allocation4]
    $region13: #{tpu_custom_call.1} parent=1 // pred_fallthru
      _
    // Predicated region
    $region14: #{tpu_custom_call.1} parent=1 // pred_check
      _
    $region15: #{tpu_custom_call.1} parent=1 // pred_check_branch
      %36 = sbr.rel (0) target = $region17
    $region16: #{tpu_custom_call.1} parent=1 // pred_region
      %37 = dma.done [#allocation4], 128
    $region17: #{tpu_custom_call.1} parent=1 // pred_fallthru
      _
    %38 = vsyncpa [#allocation3], 1
    %39 = vsyncpa [#allocation4], 1

</llo_original>
